<compile_context>
chip_gen: v7x
topology: tpu7x:2x2x1
jax: 0.10.0
libtpu: 0.0.40
codegen_flags: <defaults>
</compile_context>

<pallas_src>
import functools

import jax
import jax.numpy as jnp
from jax.experimental import pallas as pl
from jax.experimental.pallas import tpu as pltpu

EPS = 1e-5          # PyTorch BatchNorm1d default eps
LANE = 128
SUBLANE = 8


def _round_up(x, m):
    return (x + m - 1) // m * m


def _supports_buffered():
    # pipeline_mode=pl.Buffered(1) single-buffers constant-index operands,
    # halving their VMEM footprint.  Fall back gracefully if unavailable.
    if not hasattr(pl, "Buffered"):
        return False
    try:
        pl.BlockSpec((8, 128), lambda i: (0, 0), pipeline_mode=pl.Buffered(1))
        return True
    except TypeError:
        return False


_HAS_BUFFERED = _supports_buffered()
_CONST_BUFS = 1 if _HAS_BUFFERED else 2


def _const_spec(block_shape):
    """BlockSpec for an operand whose block never changes across the grid."""
    ndim = len(block_shape)
    index_map = lambda i, _n=ndim: (0,) * _n
    if _HAS_BUFFERED:
        return pl.BlockSpec(block_shape, index_map, pipeline_mode=pl.Buffered(1))
    return pl.BlockSpec(block_shape, index_map)


def _vmem_capacity_bytes():
    # Generation-aware VMEM capacity (v5e/v6e: 128 MiB, v7x: 64 MiB per TC).
    # Conservative v7x fallback if the query is unavailable.
    try:
        info = pltpu.get_tpu_info()
        for attr in ("vmem_capacity_bytes", "vmem_size_bytes", "vmem_bytes"):
            v = getattr(info, attr, None)
            if v:
                return int(v)
    except Exception:
        pass
    return 64 << 20


def _pass_vmem_bytes(tile_m, d_in, d_hid, d_out):
    """Per-pass VMEM residency: activations double-buffered (bf16), constant
    operands single-buffered when pl.Buffered(1) is available."""
    cb = _CONST_BUFS
    a = (2 * tile_m * d_in * 2          # x tile (bf16, double-buffered)
         + cb * d_in * d_hid * 2        # W1 (bf16)
         + 2 * tile_m * d_hid * 2       # h tile out (bf16)
         + 2 * 2 * d_hid * 4)           # partial stats out
    b = (2 * tile_m * d_hid * 2         # h tile (bf16)
         + cb * 2 * d_hid * 4           # s1, t1 (f32)
         + cb * d_hid * d_out * 2       # W2 (bf16)
         + 2 * tile_m * d_out * 2       # z tile out (bf16)
         + 2 * 2 * d_out * 4)           # partial stats out
    c = (2 * tile_m * d_out * 2         # z tile (bf16)
         + cb * 2 * d_out * 4           # s2, t2
         + 2 * tile_m * d_out * 4)      # out tile (f32)
    return a, b, c


def _pad_cast(a, shape, dtype):
    """Pad-with-zeros + cast, but a strict no-op when `a` is already canonical
    (kills the per-call HBM copies for aligned, pre-cast inputs)."""
    if a.shape == tuple(shape) and a.dtype == dtype:
        return a
    if a.shape == tuple(shape):
        return a.astype(dtype)
    out = jnp.zeros(shape, dtype)
    return out.at[tuple(slice(0, s) for s in a.shape)].set(a.astype(dtype))


# ---------------------------------------------------------------------------
# Kernels
# ---------------------------------------------------------------------------
def _linear_stats_kernel(x_ref, w_ref, h_ref, stats_ref):
    # h = x @ W1t (bf16 operands, f32 accumulation); stats in f32 before the
    # bf16 store.  Two direct row stores, no concatenate relayout.
    h = jnp.dot(x_ref[...], w_ref[...], preferred_element_type=jnp.float32)
    h_ref[...] = h.astype(h_ref.dtype)
    stats_ref[0, 0:1, :] = jnp.sum(h, axis=0, keepdims=True)
    stats_ref[0, 1:2, :] = jnp.sum(h * h, axis=0, keepdims=True)


def _bn_relu_linear_stats_kernel(n_true, tile_m,
                                 h_ref, s1_ref, t1_ref, w_ref,
                                 z_ref, stats_ref):
    # BN1 folded into one scale/shift (f32), ReLU, second matmul (bf16 -> f32),
    # plus masked per-tile stats of z (mask removes batch-padding rows).
    hn = h_ref[...].astype(jnp.float32) * s1_ref[...] + t1_ref[...]
    hr = jnp.maximum(hn, 0.0)
    z = jnp.dot(hr.astype(jnp.bfloat16), w_ref[...],
                preferred_element_type=jnp.float32)
    z_ref[...] = z.astype(z_ref.dtype)
    row = pl.program_id(0) * tile_m + jax.lax.broadcasted_iota(
        jnp.int32, (tile_m, 1), 0)
    zm = jnp.where(row < n_true, z, 0.0)
    stats_ref[0, 0:1, :] = jnp.sum(zm, axis=0, keepdims=True)
    stats_ref[0, 1:2, :] = jnp.sum(zm * zm, axis=0, keepdims=True)


def _bn_apply_kernel(z_ref, s2_ref, t2_ref, o_ref):
    o_ref[...] = (z_ref[...].astype(jnp.float32) * s2_ref[...]
                  + t2_ref[...]).astype(o_ref.dtype)


# ---------------------------------------------------------------------------
# Wrapper
# ---------------------------------------------------------------------------
@functools.partial(jax.jit, static_argnames=("tile_m",))
def projection_mlp(x, w1t, gamma1, beta1, w2t, *, tile_m=None):
    """SimSiam projector forward (training-mode BatchNorm, batch statistics).

    x:      [N, in_dim]       (f32 or bf16)
    w1t:    [in_dim, hidden]  first Linear weight, pre-transposed (W1.T)
    gamma1: [hidden]          BatchNorm1d(hidden) weight
    beta1:  [hidden]          BatchNorm1d(hidden) bias
    w2t:    [hidden, out]     second Linear weight, pre-transposed (W2.T)

    Pass bf16, 128-aligned weights and a tile-aligned batch to make the
    wrapper's pad/cast step a no-op.
    """
    n, in_dim = x.shape
    hidden = w1t.shape[1]
    out_dim = w2t.shape[1]
    f32, bf16 = jnp.float32, jnp.bfloat16

    # ---- generation-aware tile geometry -------------------------------------
    d_in = _round_up(in_dim, LANE)
    d_hid = _round_up(hidden, LANE)
    d_out = _round_up(out_dim, LANE)

    capacity = _vmem_capacity_bytes()
    budget = capacity * 3 // 4            # ~48 MiB on v7x, ~96 MiB on v5e/v6e

    if tile_m is None:
        # 512-row tiles (multiple of 256 for the MXU) when the batch allows,
        # shrunk until the largest pass fits the per-generation VMEM budget.
        tile_m = _round_up(min(512, _round_up(n, SUBLANE)), SUBLANE)
        while tile_m > SUBLANE and \
                max(_pass_vmem_bytes(tile_m, d_in, d_hid, d_out)) + (4 << 20) > budget:
            tile_m = _round_up(max(tile_m // 2, SUBLANE), SUBLANE)
    else:
        tile_m = _round_up(int(tile_m), SUBLANE)

    n_tiles = -(-n // tile_m)
    if n_tiles >= 2 and n_tiles % 2 == 1:
        # Even tile count keeps both v7x TensorCores busy on the parallel axis.
        n_tiles += 1
    n_p = n_tiles * tile_m

    need_a, need_b, need_c = _pass_vmem_bytes(tile_m, d_in, d_hid, d_out)

    def _vmem_limit(need):
        want = max(need + (4 << 20), 8 << 20)
        return int(min(want, max(capacity - (8 << 20), 8 << 20)))

    # ---- canonical operands (no-op when already padded / pre-cast) ----------
    x_p = _pad_cast(x, (n_p, d_in), bf16)
    w1_p = _pad_cast(w1t, (d_in, d_hid), bf16)
    w2_p = _pad_cast(w2t, (d_hid, d_out), bf16)
    g1_p = _pad_cast(gamma1, (d_hid,), f32)
    b1_p = _pad_cast(beta1, (d_hid,), f32)

    cparams = functools.partial(
        pltpu.CompilerParams, dimension_semantics=("parallel",))

    # ---- pass A: h = x @ W1t  (+ per-tile stats of h) ------------------------
    # (padded batch rows of x are zero -> contribute exactly zero to the stats)
    bytes_a = (n_p * d_in * 2 + d_in * d_hid * 2
               + n_p * d_hid * 2 + n_tiles * 2 * d_hid * 4)
    h, stats1 = pl.pallas_call(
        _linear_stats_kernel,
        out_shape=(jax.ShapeDtypeStruct((n_p, d_hid), bf16),
                   jax.ShapeDtypeStruct((n_tiles, 2, d_hid), f32)),
        grid=(n_tiles,),
        in_specs=[
            pl.BlockSpec((tile_m, d_in), lambda i: (i, 0)),
            _const_spec((d_in, d_hid)),
        ],
        out_specs=(
            pl.BlockSpec((tile_m, d_hid), lambda i: (i, 0)),
            pl.BlockSpec((1, 2, d_hid), lambda i: (i, 0, 0)),
        ),
        compiler_params=cparams(vmem_limit_bytes=_vmem_limit(need_a)),
        cost_estimate=pl.CostEstimate(
            flops=int(2 * n_p * d_in * d_hid), transcendentals=0,
            bytes_accessed=int(bytes_a)),
    )(x_p, w1_p)

    # BN1 batch stats (biased variance, PyTorch training mode) folded with
    # gamma/beta into one scale/shift.
    # TODO(synk): E[x^2]-E[x]^2 is cancellation-prone for large-mean features;
    # switch to shifted/centered partial sums if tighter accuracy is needed.
    tot1 = jnp.sum(stats1, axis=0)
    mean1 = tot1[0] / n
    var1 = jnp.maximum(tot1[1] / n - mean1 * mean1, 0.0)
    inv1 = jax.lax.rsqrt(var1 + EPS)
    s1 = (g1_p * inv1).reshape(1, d_hid)
    t1 = (b1_p - mean1 * g1_p * inv1).reshape(1, d_hid)

    # ---- pass B: z = relu(h*s1 + t1) @ W2t  (+ masked per-tile stats) --------
    bytes_b = (n_p * d_hid * 2 + 2 * d_hid * 4 + d_hid * d_out * 2
               + n_p * d_out * 2 + n_tiles * 2 * d_out * 4)
    kernel_b = functools.partial(_bn_relu_linear_stats_kernel, n, tile_m)
    z, stats2 = pl.pallas_call(
        kernel_b,
        out_shape=(jax.ShapeDtypeStruct((n_p, d_out), bf16),
                   jax.ShapeDtypeStruct((n_tiles, 2, d_out), f32)),
        grid=(n_tiles,),
        in_specs=[
            pl.BlockSpec((tile_m, d_hid), lambda i: (i, 0)),
            _const_spec((1, d_hid)),
            _const_spec((1, d_hid)),
            _const_spec((d_hid, d_out)),
        ],
        out_specs=(
            pl.BlockSpec((tile_m, d_out), lambda i: (i, 0)),
            pl.BlockSpec((1, 2, d_out), lambda i: (i, 0, 0)),
        ),
        compiler_params=cparams(vmem_limit_bytes=_vmem_limit(need_b)),
        cost_estimate=pl.CostEstimate(
            flops=int(2 * n_p * d_hid * d_out), transcendentals=0,
            bytes_accessed=int(bytes_b)),
    )(h, s1, t1, w2_p)

    # BN2 (affine=False) folded into scale/shift.
    tot2 = jnp.sum(stats2, axis=0)
    mean2 = tot2[0] / n
    var2 = jnp.maximum(tot2[1] / n - mean2 * mean2, 0.0)
    inv2 = jax.lax.rsqrt(var2 + EPS)
    s2 = inv2.reshape(1, d_out)
    t2 = (-mean2 * inv2).reshape(1, d_out)

    # ---- pass C: out = z*s2 + t2 (pure bandwidth, lane-dense stores) ---------
    # TODO(synk): z (bf16) and out (f32) differ in dtype so input_output
    # aliasing is not applicable; emit bf16 here if the consumer allows it.
    bytes_c = n_p * d_out * 2 + 2 * d_out * 4 + n_p * d_out * 4
    out_full = pl.pallas_call(
        _bn_apply_kernel,
        out_shape=jax.ShapeDtypeStruct((n_p, d_out), f32),
        grid=(n_tiles,),
        in_specs=[
            pl.BlockSpec((tile_m, d_out), lambda i: (i, 0)),
            _const_spec((1, d_out)),
            _const_spec((1, d_out)),
        ],
        out_specs=pl.BlockSpec((tile_m, d_out), lambda i: (i, 0)),
        compiler_params=cparams(vmem_limit_bytes=_vmem_limit(need_c)),
        cost_estimate=pl.CostEstimate(
            flops=int(2 * n_p * d_out), transcendentals=0,
            bytes_accessed=int(bytes_c)),
    )(z, s2, t2)

    return out_full[:n, :out_dim]


# ---------------------------------------------------------------------------
# Reference (same math and dtype policy as the kernel pipeline, pure JAX)
# ---------------------------------------------------------------------------
def reference_jax(x, w1t, gamma1, beta1, w2t):
    n = x.shape[0]
    bf16, f32 = jnp.bfloat16, jnp.float32
    h = jnp.dot(x.astype(bf16), w1t.astype(bf16),
                preferred_element_type=jnp.float32)
    mean1 = jnp.sum(h, axis=0) / n
    var1 = jnp.maximum(jnp.sum(h * h, axis=0) / n - mean1 * mean1, 0.0)
    inv1 = jax.lax.rsqrt(var1 + EPS)
    s1 = gamma1 * inv1
    t1 = beta1 - mean1 * s1
    h_b = h.astype(bf16).astype(f32)           # bf16 HBM round-trip as in kernel
    hr = jnp.maximum(h_b * s1 + t1, 0.0)
    z = jnp.dot(hr.astype(bf16), w2t.astype(bf16),
                preferred_element_type=jnp.float32)
    mean2 = jnp.sum(z, axis=0) / n
    var2 = jnp.maximum(jnp.sum(z * z, axis=0) / n - mean2 * mean2, 0.0)
    inv2 = jax.lax.rsqrt(var2 + EPS)
    z_b = z.astype(bf16).astype(f32)            # bf16 HBM round-trip as in kernel
    return z_b * inv2 + (-mean2 * inv2)


if __name__ == "__main__":
    # Small shapes consistent with the module; tile_m=8 forces several batch
    # tiles, even-tile rounding, batch padding and the masked-stats path.
    N, IN_DIM, HIDDEN, OUT_DIM = 20, 32, 32, 16

    key = jax.random.PRNGKey(0)
    kx, k1, k2, kg, kb = jax.random.split(key, 5)

    x = jax.random.normal(kx, (N, IN_DIM), dtype=jnp.float32)

    # Canonical pre-transposed weight layout (== PyTorch Linear weight .T).
    bound1 = 1.0 / (IN_DIM ** 0.5)
    w1t = jax.random.uniform(k1, (IN_DIM, HIDDEN), jnp.float32, -bound1, bound1)
    bound2 = 1.0 / (HIDDEN ** 0.5)
    w2t = jax.random.uniform(k2, (HIDDEN, OUT_DIM), jnp.float32, -bound2, bound2)

    # Non-trivial BN affine params so the gamma/beta path is actually tested.
    gamma1 = 1.0 + 0.1 * jax.random.normal(kg, (HIDDEN,), jnp.float32)
    beta1 = 0.1 * jax.random.normal(kb, (HIDDEN,), jnp.float32)

    ref = reference_jax(x, w1t, gamma1, beta1, w2t)

    # Multi-tile path (padding + masking + even-tile rounding).
    out_a = jax.block_until_ready(
        projection_mlp(x, w1t, gamma1, beta1, w2t, tile_m=8))
    # Default auto-tiled path (single tile here).
    out_b = jax.block_until_ready(
        projection_mlp(x, w1t, gamma1, beta1, w2t))

    for out in (out_a, out_b):
        assert out.shape == (N, OUT_DIM)
        assert jnp.allclose(out, ref, atol=2e-3, rtol=2e-3), "mismatch vs reference"

    print("KERNEL_OK")
</pallas_src>

<mosaic_0001>
module attributes {stable_mosaic.version = 11 : i64} {
  func.func @_linear_stats_kernel(%arg0: i32, %arg1: memref<8x128xbf16, #tpu.memory_space<vmem>>, %arg2: memref<128x128xbf16, #tpu.memory_space<vmem>>, %arg3: memref<8x128xbf16, #tpu.memory_space<vmem>>, %arg4: memref<1x2x128xf32, #tpu.memory_space<vmem>>) attributes {dimension_semantics = [#tpu.dimension_semantics<parallel>], iteration_bounds = array<i64: 4>, scalar_prefetch = 0 : i64, scratch_operands = 0 : i64, tpu.core_type = #tpu.core_type<tc>, window_params = [{transform_indices = @transform_0, window_bounds = array<i64: 8, 128>}, {pipeline_mode = #tpu.pipeline_mode<synchronous>, transform_indices = @transform_1, window_bounds = array<i64: 128, 128>}, {transform_indices = @transform_2, window_bounds = array<i64: 8, 128>}, {transform_indices = @transform_3, window_bounds = array<i64: 1, 2, 128>}]} {
    %c0 = arith.constant 0 : index
    %c0_0 = arith.constant 0 : index
    %0 = vector.load %arg1[%c0, %c0_0] : memref<8x128xbf16, #tpu.memory_space<vmem>>, vector<8x128xbf16>
    %c0_1 = arith.constant 0 : index
    %c0_2 = arith.constant 0 : index
    %1 = vector.load %arg2[%c0_1, %c0_2] : memref<128x128xbf16, #tpu.memory_space<vmem>>, vector<128x128xbf16>
    %cst = arith.constant dense<0.000000e+00> : vector<8x128xf32>
    %2 = tpu.matmul %0, %1, %cst {dimension_numbers = #tpu.dot_dimension_numbers<[1], [0], [0], [1], [0, 0, 1, 1], [], []>} : vector<8x128xbf16>, vector<128x128xbf16>, vector<8x128xf32> -> vector<8x128xf32>
    %3 = arith.truncf %2 : vector<8x128xf32> to vector<8x128xbf16>
    %c0_3 = arith.constant 0 : index
    %c0_4 = arith.constant 0 : index
    %4 = vector.load %arg3[%c0_3, %c0_4] : memref<8x128xbf16, #tpu.memory_space<vmem>>, vector<8x128xbf16>
    tpu.vector_store %arg3[%c0_3, %c0_4], %3 {strides = array<i32>} : memref<8x128xbf16, #tpu.memory_space<vmem>>, vector<8x128xbf16>,
    %cst_5 = arith.constant dense<0.000000e+00> : vector<128xf32>
    %5 = vector.multi_reduction <add>, %2, %cst_5 [0] : vector<8x128xf32> to vector<128xf32>
    %6 = vector.shape_cast %5 : vector<128xf32> to vector<1x128xf32>
    %c0_6 = arith.constant 0 : index
    %c0_7 = arith.constant 0 : index
    %c0_8 = arith.constant 0 : index
    %7 = vector.load %arg4[%c0_6, %c0_7, %c0_8] : memref<1x2x128xf32, #tpu.memory_space<vmem>>, vector<1x1x128xf32>
    %8 = vector.shape_cast %7 : vector<1x1x128xf32> to vector<1x128xf32>
    %9 = vector.shape_cast %6 : vector<1x128xf32> to vector<1x1x128xf32>
    tpu.vector_store %arg4[%c0_6, %c0_7, %c0_8], %9 {strides = array<i32>} : memref<1x2x128xf32, #tpu.memory_space<vmem>>, vector<1x1x128xf32>,
    %10 = arith.mulf %2, %2 : vector<8x128xf32>
    %cst_9 = arith.constant dense<0.000000e+00> : vector<128xf32>
    %11 = vector.multi_reduction <add>, %10, %cst_9 [0] : vector<8x128xf32> to vector<128xf32>
    %12 = vector.shape_cast %11 : vector<128xf32> to vector<1x128xf32>
    %c0_10 = arith.constant 0 : index
    %c1 = arith.constant 1 : index
    %c0_11 = arith.constant 0 : index
    %13 = vector.load %arg4[%c0_10, %c1, %c0_11] : memref<1x2x128xf32, #tpu.memory_space<vmem>>, vector<1x1x128xf32>
    %14 = vector.shape_cast %13 : vector<1x1x128xf32> to vector<1x128xf32>
    %15 = vector.shape_cast %12 : vector<1x128xf32> to vector<1x1x128xf32>
    tpu.vector_store %arg4[%c0_10, %c1, %c0_11], %15 {strides = array<i32>} : memref<1x2x128xf32, #tpu.memory_space<vmem>>, vector<1x1x128xf32>,
    return
  }
  func.func @transform_0(%arg0: i32) -> (i32, i32) {
    %c0_i32 = arith.constant 0 : i32
    %c0_i32_0 = arith.constant 0 : i32
    return %arg0, %c0_i32 : i32, i32
  }
  func.func @transform_1(%arg0: i32) -> (i32, i32) {
    %c0_i32 = arith.constant 0 : i32
    %c0_i32_0 = arith.constant 0 : i32
    %c0_i32_1 = arith.constant 0 : i32
    return %c0_i32, %c0_i32_0 : i32, i32
  }
  func.func @transform_2(%arg0: i32) -> (i32, i32) {
    %c0_i32 = arith.constant 0 : i32
    %c0_i32_0 = arith.constant 0 : i32
    return %arg0, %c0_i32 : i32, i32
  }
  func.func @transform_3(%arg0: i32) -> (i32, i32, i32) {
    %c0_i32 = arith.constant 0 : i32
    %c0_i32_0 = arith.constant 0 : i32
    %c0_i32_1 = arith.constant 0 : i32
    return %arg0, %c0_i32, %c0_i32_0 : i32, i32, i32
  }
}

module attributes {stable_mosaic.version = 11 : i64} {
  func.func @_bn_apply_kernel(%arg0: i32, %arg1: memref<8x128xbf16, #tpu.memory_space<vmem>>, %arg2: memref<1x128xf32, #tpu.memory_space<vmem>>, %arg3: memref<1x128xf32, #tpu.memory_space<vmem>>, %arg4: memref<8x128xf32, #tpu.memory_space<vmem>>) attributes {dimension_semantics = [#tpu.dimension_semantics<parallel>], iteration_bounds = array<i64: 4>, scalar_prefetch = 0 : i64, scratch_operands = 0 : i64, tpu.core_type = #tpu.core_type<tc>, window_params = [{transform_indices = @transform_0, window_bounds = array<i64: 8, 128>}, {pipeline_mode = #tpu.pipeline_mode<synchronous>, transform_indices = @transform_1, window_bounds = array<i64: 1, 128>}, {pipeline_mode = #tpu.pipeline_mode<synchronous>, transform_indices = @transform_2, window_bounds = array<i64: 1, 128>}, {transform_indices = @transform_3, window_bounds = array<i64: 8, 128>}]} {
    %c0 = arith.constant 0 : index
    %c0_0 = arith.constant 0 : index
    %0 = vector.load %arg1[%c0, %c0_0] : memref<8x128xbf16, #tpu.memory_space<vmem>>, vector<8x128xbf16>
    %1 = arith.extf %0 : vector<8x128xbf16> to vector<8x128xf32>
    %c0_1 = arith.constant 0 : index
    %c0_2 = arith.constant 0 : index
    %2 = vector.load %arg2[%c0_1, %c0_2] : memref<1x128xf32, #tpu.memory_space<vmem>>, vector<1x128xf32>
    %3 = vector.broadcast %2 : vector<1x128xf32> to vector<8x128xf32>
    %4 = arith.mulf %1, %3 : vector<8x128xf32>
    %c0_3 = arith.constant 0 : index
    %c0_4 = arith.constant 0 : index
    %5 = vector.load %arg3[%c0_3, %c0_4] : memref<1x128xf32, #tpu.memory_space<vmem>>, vector<1x128xf32>
    %6 = vector.broadcast %5 : vector<1x128xf32> to vector<8x128xf32>
    %7 = arith.addf %4, %6 : vector<8x128xf32>
    %c0_5 = arith.constant 0 : index
    %c0_6 = arith.constant 0 : index
    %8 = vector.load %arg4[%c0_5, %c0_6] : memref<8x128xf32, #tpu.memory_space<vmem>>, vector<8x128xf32>
    tpu.vector_store %arg4[%c0_5, %c0_6], %7 {strides = array<i32>} : memref<8x128xf32, #tpu.memory_space<vmem>>, vector<8x128xf32>,
    return
  }
  func.func @transform_0(%arg0: i32) -> (i32, i32) {
    %c0_i32 = arith.constant 0 : i32
    %c0_i32_0 = arith.constant 0 : i32
    return %arg0, %c0_i32 : i32, i32
  }
  func.func @transform_1(%arg0: i32) -> (i32, i32) {
    %c0_i32 = arith.constant 0 : i32
    %c0_i32_0 = arith.constant 0 : i32
    %c0_i32_1 = arith.constant 0 : i32
    return %c0_i32, %c0_i32_0 : i32, i32
  }
  func.func @transform_2(%arg0: i32) -> (i32, i32) {
    %c0_i32 = arith.constant 0 : i32
    %c0_i32_0 = arith.constant 0 : i32
    %c0_i32_1 = arith.constant 0 : i32
    return %c0_i32, %c0_i32_0 : i32, i32
  }
  func.func @transform_3(%arg0: i32) -> (i32, i32) {
    %c0_i32 = arith.constant 0 : i32
    %c0_i32_0 = arith.constant 0 : i32
    return %arg0, %c0_i32 : i32, i32
  }
}

module attributes {stable_mosaic.version = 11 : i64} {
  func.func @_bn_relu_linear_stats_kernel(%arg0: i32, %arg1: memref<8x128xbf16, #tpu.memory_space<vmem>>, %arg2: memref<1x128xf32, #tpu.memory_space<vmem>>, %arg3: memref<1x128xf32, #tpu.memory_space<vmem>>, %arg4: memref<128x128xbf16, #tpu.memory_space<vmem>>, %arg5: memref<8x128xbf16, #tpu.memory_space<vmem>>, %arg6: memref<1x2x128xf32, #tpu.memory_space<vmem>>) attributes {dimension_semantics = [#tpu.dimension_semantics<parallel>], iteration_bounds = array<i64: 4>, scalar_prefetch = 0 : i64, scratch_operands = 0 : i64, tpu.core_type = #tpu.core_type<tc>, window_params = [{transform_indices = @transform_0, window_bounds = array<i64: 8, 128>}, {pipeline_mode = #tpu.pipeline_mode<synchronous>, transform_indices = @transform_1, window_bounds = array<i64: 1, 128>}, {pipeline_mode = #tpu.pipeline_mode<synchronous>, transform_indices = @transform_2, window_bounds = array<i64: 1, 128>}, {pipeline_mode = #tpu.pipeline_mode<synchronous>, transform_indices = @transform_3, window_bounds = array<i64: 128, 128>}, {transform_indices = @transform_4, window_bounds = array<i64: 8, 128>}, {transform_indices = @transform_5, window_bounds = array<i64: 1, 2, 128>}]} {
    %c0 = arith.constant 0 : index
    %c0_0 = arith.constant 0 : index
    %0 = vector.load %arg1[%c0, %c0_0] : memref<8x128xbf16, #tpu.memory_space<vmem>>, vector<8x128xbf16>
    %1 = arith.extf %0 : vector<8x128xbf16> to vector<8x128xf32>
    %c0_1 = arith.constant 0 : index
    %c0_2 = arith.constant 0 : index
    %2 = vector.load %arg2[%c0_1, %c0_2] : memref<1x128xf32, #tpu.memory_space<vmem>>, vector<1x128xf32>
    %3 = vector.broadcast %2 : vector<1x128xf32> to vector<8x128xf32>
    %4 = arith.mulf %1, %3 : vector<8x128xf32>
    %c0_3 = arith.constant 0 : index
    %c0_4 = arith.constant 0 : index
    %5 = vector.load %arg3[%c0_3, %c0_4] : memref<1x128xf32, #tpu.memory_space<vmem>>, vector<1x128xf32>
    %6 = vector.broadcast %5 : vector<1x128xf32> to vector<8x128xf32>
    %7 = arith.addf %4, %6 : vector<8x128xf32>
    %cst = arith.constant 0.000000e+00 : f32
    %8 = vector.broadcast %cst : f32 to vector<8x128xf32>
    %9 = arith.maximumf %7, %8 : vector<8x128xf32>
    %10 = arith.truncf %9 : vector<8x128xf32> to vector<8x128xbf16>
    %c0_5 = arith.constant 0 : index
    %c0_6 = arith.constant 0 : index
    %11 = vector.load %arg4[%c0_5, %c0_6] : memref<128x128xbf16, #tpu.memory_space<vmem>>, vector<128x128xbf16>
    %cst_7 = arith.constant dense<0.000000e+00> : vector<8x128xf32>
    %12 = tpu.matmul %10, %11, %cst_7 {dimension_numbers = #tpu.dot_dimension_numbers<[1], [0], [0], [1], [0, 0, 1, 1], [], []>} : vector<8x128xbf16>, vector<128x128xbf16>, vector<8x128xf32> -> vector<8x128xf32>
    %13 = arith.truncf %12 : vector<8x128xf32> to vector<8x128xbf16>
    %c0_8 = arith.constant 0 : index
    %c0_9 = arith.constant 0 : index
    %14 = vector.load %arg5[%c0_8, %c0_9] : memref<8x128xbf16, #tpu.memory_space<vmem>>, vector<8x128xbf16>
    tpu.vector_store %arg5[%c0_8, %c0_9], %13 {strides = array<i32>} : memref<8x128xbf16, #tpu.memory_space<vmem>>, vector<8x128xbf16>,
    %c8_i32 = arith.constant 8 : i32
    %15 = arith.muli %arg0, %c8_i32 : i32
    %16 = tpu.iota {dimensions = array<i32: 0>} : vector<8x1xi32>
    %17 = vector.broadcast %15 : i32 to vector<8x1xi32>
    %18 = arith.addi %17, %16 : vector<8x1xi32>
    %c20_i32 = arith.constant 20 : i32
    %19 = vector.broadcast %c20_i32 : i32 to vector<8x1xi32>
    %20 = arith.cmpi slt, %18, %19 : vector<8x1xi32>
    %cst_10 = arith.constant 0.000000e+00 : f32
    %21 = vector.shape_cast %20 : vector<8x1xi1> to vector<8x1xi1>
    %22 = vector.broadcast %21 : vector<8x1xi1> to vector<8x128xi1>
    %23 = vector.broadcast %cst_10 : f32 to vector<8x128xf32>
    %24 = arith.select %22, %12, %23 : vector<8x128xi1>, vector<8x128xf32>
    %cst_11 = arith.constant dense<0.000000e+00> : vector<128xf32>
    %25 = vector.multi_reduction <add>, %24, %cst_11 [0] : vector<8x128xf32> to vector<128xf32>
    %26 = vector.shape_cast %25 : vector<128xf32> to vector<1x128xf32>
    %c0_12 = arith.constant 0 : index
    %c0_13 = arith.constant 0 : index
    %c0_14 = arith.constant 0 : index
    %27 = vector.load %arg6[%c0_12, %c0_13, %c0_14] : memref<1x2x128xf32, #tpu.memory_space<vmem>>, vector<1x1x128xf32>
    %28 = vector.shape_cast %27 : vector<1x1x128xf32> to vector<1x128xf32>
    %29 = vector.shape_cast %26 : vector<1x128xf32> to vector<1x1x128xf32>
    tpu.vector_store %arg6[%c0_12, %c0_13, %c0_14], %29 {strides = array<i32>} : memref<1x2x128xf32, #tpu.memory_space<vmem>>, vector<1x1x128xf32>,
    %30 = arith.mulf %24, %24 : vector<8x128xf32>
    %cst_15 = arith.constant dense<0.000000e+00> : vector<128xf32>
    %31 = vector.multi_reduction <add>, %30, %cst_15 [0] : vector<8x128xf32> to vector<128xf32>
    %32 = vector.shape_cast %31 : vector<128xf32> to vector<1x128xf32>
    %c0_16 = arith.constant 0 : index
    %c1 = arith.constant 1 : index
    %c0_17 = arith.constant 0 : index
    %33 = vector.load %arg6[%c0_16, %c1, %c0_17] : memref<1x2x128xf32, #tpu.memory_space<vmem>>, vector<1x1x128xf32>
    %34 = vector.shape_cast %33 : vector<1x1x128xf32> to vector<1x128xf32>
    %35 = vector.shape_cast %32 : vector<1x128xf32> to vector<1x1x128xf32>
    tpu.vector_store %arg6[%c0_16, %c1, %c0_17], %35 {strides = array<i32>} : memref<1x2x128xf32, #tpu.memory_space<vmem>>, vector<1x1x128xf32>,
    return
  }
  func.func @transform_0(%arg0: i32) -> (i32, i32) {
    %c0_i32 = arith.constant 0 : i32
    %c0_i32_0 = arith.constant 0 : i32
    return %arg0, %c0_i32 : i32, i32
  }
  func.func @transform_1(%arg0: i32) -> (i32, i32) {
    %c0_i32 = arith.constant 0 : i32
    %c0_i32_0 = arith.constant 0 : i32
    %c0_i32_1 = arith.constant 0 : i32
    return %c0_i32, %c0_i32_0 : i32, i32
  }
  func.func @transform_2(%arg0: i32) -> (i32, i32) {
    %c0_i32 = arith.constant 0 : i32
    %c0_i32_0 = arith.constant 0 : i32
    %c0_i32_1 = arith.constant 0 : i32
    return %c0_i32, %c0_i32_0 : i32, i32
  }
  func.func @transform_3(%arg0: i32) -> (i32, i32) {
    %c0_i32 = arith.constant 0 : i32
    %c0_i32_0 = arith.constant 0 : i32
    %c0_i32_1 = arith.constant 0 : i32
    return %c0_i32, %c0_i32_0 : i32, i32
  }
  func.func @transform_4(%arg0: i32) -> (i32, i32) {
    %c0_i32 = arith.constant 0 : i32
    %c0_i32_0 = arith.constant 0 : i32
    return %arg0, %c0_i32 : i32, i32
  }
  func.func @transform_5(%arg0: i32) -> (i32, i32, i32) {
    %c0_i32 = arith.constant 0 : i32
    %c0_i32_0 = arith.constant 0 : i32
    %c0_i32_1 = arith.constant 0 : i32
    return %arg0, %c0_i32, %c0_i32_0 : i32, i32, i32
  }
}

</mosaic_0001>

<llo_original>
// kernel: projection_mlp.5
$region0: #{projection_mlp.5}
  #allocation0 [shape = 'u32[]', space=smem, size = 0x4, offset = 0x4, fixed_abs, tag = 'smem constant byte address 0x4 - core index']
  #allocation1 [shape = 'u32[144,128]{1,0:T(1,128)}', space=vmem, size = 0x12000, scoped, tag = 'internal scratch']
  %s0 = inlined_call_operand.vmem [shape: bf16[32,128], index: 0, kind: input, shape index: {}]
  %s1 = inlined_call_operand.vmem [shape: f32[1,128], index: 1, kind: input, shape index: {}]
  %s2 = inlined_call_operand.vmem [shape: f32[1,128], index: 2, kind: input, shape index: {}]
  %s3 = inlined_call_operand.vmem [shape: f32[32,128], index: 3, kind: output, shape index: {}]
  %s4 = sld [smem:[#allocation0]]
  $region45: #{projection_mlp.5} parent=0
    _
  %s6 = ssub.s32 1, %s4
  %s7 = scalar_select 0, %s6, %s4
  loop: start=0, step=1, limit=6
  $region2: #{projection_mlp.5} parent=0 // loop_pre_header
    _
  $region3: #{projection_mlp.5} parent=0 // loop_header
    %s9 = sphi 0, %s13
    %p10 = scmp.ge.s32.totalorder %s9, 6
    %s19 = sphi 0, %s21
    %s22 = sphi 0, %s19
    %s23 = sphi 0, %s22
    %s39 = sphi 0, %s23
    %s43 = sphi 0, %s43
    %s45 = sphi 0, %s43
    %s46 = sphi 0, %s45
    %s60 = sphi 0, %s46
    %s64 = sphi 0, %s64
    %s66 = sphi 0, %s64
    %s67 = sphi 0, %s66
    %s81 = sphi 0, %s67
    %s87 = sphi 0, %s89
    %s90 = sphi 0, %s87
    %s91 = sphi 0, %s90
    %s107 = sphi 0, %s91
  $region4: #{projection_mlp.5} parent=0 // loop_header_branch
    %12 = sbr.rel (%p10) target = $region8
  $region5: #{projection_mlp.5} parent=0 // loop_body
    %s14 = ssub.s32 %s9, 1
    %s15 = ssub.s32 %s9, 2
    %s16 = sadd.s32 %s9, 1
    %s17 = ssub.s32 %s9, %s16
    %p18 = scmp.eq.s32.totalorder %s17, 0
    %s20 = sadd.s32 %s19, 1
    %s21 = scalar_select %p18, %s19, %s20
    %p24 = pneg %p18
    %p25 = scmp.eq.s32.totalorder %s9, 3
    %p26 = por %p24, %p25
    %p27 = scmp.ne.s32.totalorder %s19, %s22
    %p28 = scmp.eq.s32.totalorder %s9, 0
    %p29 = por %p27, %p28
    %p30 = scmp.ne.s32.totalorder %s19, %s22
    %p31 = scmp.eq.s32.totalorder %s14, 3
    %p32 = por %p30, %p31
    %p33 = scmp.ne.s32.totalorder %s22, %s23
    %p34 = scmp.eq.s32.totalorder %s14, 0
    %p35 = por %p33, %p34
    %p36 = scmp.ne.s32.totalorder %s22, %s23
    %p37 = scmp.eq.s32.totalorder %s15, 3
    %p38 = por %p36, %p37
    %p40 = scmp.ne.s32.totalorder %s23, %s39
    %p41 = scmp.eq.s32.totalorder %s15, 0
    %p42 = por %p40, %p41
    %s44 = sadd.s32 %s43, 1
    %p47 = scmp.eq.s32.totalorder %s9, 3
    %p48 = scmp.ne.s32.totalorder %s43, %s45
    %p49 = scmp.eq.s32.totalorder %s9, 0
    %p50 = por %p48, %p49
    %p51 = scmp.ne.s32.totalorder %s43, %s45
    %p52 = scmp.eq.s32.totalorder %s14, 3
    %p53 = por %p51, %p52
    %p54 = scmp.ne.s32.totalorder %s45, %s46
    %p55 = scmp.eq.s32.totalorder %s14, 0
    %p56 = por %p54, %p55
    %p57 = scmp.ne.s32.totalorder %s45, %s46
    %p58 = scmp.eq.s32.totalorder %s15, 3
    %p59 = por %p57, %p58
    %p61 = scmp.ne.s32.totalorder %s46, %s60
    %p62 = scmp.eq.s32.totalorder %s15, 0
    %p63 = por %p61, %p62
    %s65 = sadd.s32 %s64, 1
    %p68 = scmp.eq.s32.totalorder %s9, 3
    %p69 = scmp.ne.s32.totalorder %s64, %s66
    %p70 = scmp.eq.s32.totalorder %s9, 0
    %p71 = por %p69, %p70
    %p72 = scmp.ne.s32.totalorder %s64, %s66
    %p73 = scmp.eq.s32.totalorder %s14, 3
    %p74 = por %p72, %p73
    %p75 = scmp.ne.s32.totalorder %s66, %s67
    %p76 = scmp.eq.s32.totalorder %s14, 0
    %p77 = por %p75, %p76
    %p78 = scmp.ne.s32.totalorder %s66, %s67
    %p79 = scmp.eq.s32.totalorder %s15, 3
    %p80 = por %p78, %p79
    %p82 = scmp.ne.s32.totalorder %s67, %s81
    %p83 = scmp.eq.s32.totalorder %s15, 0
    %p84 = por %p82, %p83
    %s85 = ssub.s32 %s9, %s16
    %p86 = scmp.eq.s32.totalorder %s85, 0
    %s88 = sadd.s32 %s87, 1
    %s89 = scalar_select %p86, %s87, %s88
    %p92 = pneg %p86
    %p93 = scmp.eq.s32.totalorder %s9, 3
    %p94 = por %p92, %p93
    %p95 = scmp.ne.s32.totalorder %s87, %s90
    %p96 = scmp.eq.s32.totalorder %s9, 0
    %p97 = por %p95, %p96
    %p98 = scmp.ne.s32.totalorder %s87, %s90
    %p99 = scmp.eq.s32.totalorder %s14, 3
    %p100 = por %p98, %p99
    %p101 = scmp.ne.s32.totalorder %s90, %s91
    %p102 = scmp.eq.s32.totalorder %s14, 0
    %p103 = por %p101, %p102
    %p104 = scmp.ne.s32.totalorder %s90, %s91
    %p105 = scmp.eq.s32.totalorder %s15, 3
    %p106 = por %p104, %p105
    %p108 = scmp.ne.s32.totalorder %s91, %s107
    %p109 = scmp.eq.s32.totalorder %s15, 0
    %p110 = por %p108, %p109
    %p111 = scmp.le.s32.totalorder 1, %s9
    %p112 = scmp.lt.s32.totalorder %s9, 5
    %p113 = pnand %p111, %p112
    %p114 = pneg %p113
    // Predicated region
    $region9: #{projection_mlp.5} parent=5 // pred_check
      _
    $region10: #{projection_mlp.5} parent=5 // pred_check_branch
      %116 = sbr.rel (%p113) target = $region12
    $region11: #{projection_mlp.5} parent=5 // pred_region
      %s117 = ssub.s32 %s9, 1
      // Predicated region
      $region13: #{projection_mlp.5} parent=11 // pred_check
        %p118 = pneg %p56
      $region14: #{projection_mlp.5} parent=11 // pred_check_branch
        %120 = sbr.rel (%p118) target = $region16
      $region15: #{projection_mlp.5} parent=11 // pred_region
        _
      $region16: #{projection_mlp.5} parent=11 // pred_fallthru
        _
      // Predicated region
      $region17: #{projection_mlp.5} parent=11 // pred_check
        %p121 = pneg %p77
      $region18: #{projection_mlp.5} parent=11 // pred_check_branch
        %123 = sbr.rel (%p121) target = $region20
      $region19: #{projection_mlp.5} parent=11 // pred_region
        _
      $region20: #{projection_mlp.5} parent=11 // pred_fallthru
        _
    $region12: #{projection_mlp.5} parent=5 // pred_fallthru
      _
    %p124 = scmp.lt.s32.totalorder %s9, 4
    // Predicated region
    $region21: #{projection_mlp.5} parent=5 // pred_check
      %p125 = pneg %p124
    $region22: #{projection_mlp.5} parent=5 // pred_check_branch
      %127 = sbr.rel (%p125) target = $region24
    $region23: #{projection_mlp.5} parent=5 // pred_region
      // Predicated region
      $region25: #{projection_mlp.5} parent=23 // pred_check
        %p128 = pneg %p29
      $region26: #{projection_mlp.5} parent=23 // pred_check_branch
        %130 = sbr.rel (%p128) target = $region28
      $region27: #{projection_mlp.5} parent=23 // pred_region
        %p131 = scmp.lt.s32.totalorder %s9, 3
        %s132 = scalar_select %p131, %s9, 3
        %s133 = smul.addr %s132, 4
        %s134 = scalar_lea.vmem %s0, %s133
      $region28: #{projection_mlp.5} parent=23 // pred_fallthru
        _
    $region24: #{projection_mlp.5} parent=5 // pred_fallthru
      _
    %p135 = scmp.le.s32.totalorder 1, %s9
    %p136 = scmp.lt.s32.totalorder %s9, 5
    %p137 = pnand %p135, %p136
    %p138 = pneg %p137
    // Predicated region
    $region29: #{projection_mlp.5} parent=5 // pred_check
      _
    $region30: #{projection_mlp.5} parent=5 // pred_check_branch
      %140 = sbr.rel (%p137) target = $region32
    $region31: #{projection_mlp.5} parent=5 // pred_region
      %s141 = ssub.s32 %s9, 1
      %p142 = scmp.lt.s32.totalorder %s14, 3
      %s143 = scalar_select %p142, %s14, 3
      %s144 = smul.addr %s143, 4
      %s145 = scalar_lea.vmem %s0, %s144
      %p146 = pneg %p35
      %p147 = pneg %p32
      %p148 = pneg %p56
      %p149 = pneg %p53
      %p150 = pneg %p77
      %p151 = pneg %p74
      %p152 = pneg %p103
      %p153 = pneg %p100
      %p154 = scmp.lt.s32.totalorder %s14, 3
      %s155 = scalar_select %p154, %s14, 3
      %s156 = smul.addr %s155, 8
      %s157 = scalar_lea.vmem %s3, %s156
      %p158 = scmp.lt.s32.totalorder %s14, 3
      %s159 = scalar_select %p158, %s14, 3
      %s160 = smul.addr %s159, 4
      %s161 = scalar_lea.vmem %s0, %s160
      %p162 = scmp.lt.s32.totalorder %s14, 3
      %s163 = scalar_select %p162, %s14, 3
      %s164 = smul.addr %s163, 8
      %s165 = scalar_lea.vmem %s3, %s164
      %v166 = vld [vmem:[%s161] sm:$0xf]
      %v167 = vunpack.c.l.bf16 %v166
      %v168 = vld [vmem:[%s1] sm:$0x1]
      %v170 = vlaneseq
      %v171 = vshrl.u32 %v170, 7
      %v172 = vsub.s32 0, %v171
      %v173 = vrot.slane %v168, %v172
      %v175 = vmul.f32 %v167, %v173
      %v176 = vld [vmem:[%s2] sm:$0x1]
      %v178 = vlaneseq
      %v179 = vshrl.u32 %v178, 7
      %v180 = vsub.s32 0, %v179
      %v181 = vrot.slane %v176, %v180
      %v183 = vadd.f32 %v175, %v181
      %184 = vst [vmem:[%s165] sm:$0xff] %v183
      %p185 = scmp.lt.s32.totalorder %s14, 3
      %s186 = scalar_select %p185, %s14, 3
      %s187 = smul.addr %s186, 8
      %s188 = scalar_lea.vmem %s3, %s187
      // Predicated region
      $region33: #{projection_mlp.5} parent=31 // pred_check
        %p189 = pneg %p100
      $region34: #{projection_mlp.5} parent=31 // pred_check_branch
        %191 = sbr.rel (%p189) target = $region36
      $region35: #{projection_mlp.5} parent=31 // pred_region
        _
      $region36: #{projection_mlp.5} parent=31 // pred_fallthru
        _
    $region32: #{projection_mlp.5} parent=5 // pred_fallthru
      _
    %p192 = scmp.le.s32.totalorder 2, %s9
    // Predicated region
    $region37: #{projection_mlp.5} parent=5 // pred_check
      %p193 = pneg %p192
    $region38: #{projection_mlp.5} parent=5 // pred_check_branch
      %195 = sbr.rel (%p193) target = $region40
    $region39: #{projection_mlp.5} parent=5 // pred_region
      %s196 = ssub.s32 %s9, 2
      // Predicated region
      $region41: #{projection_mlp.5} parent=39 // pred_check
        %p197 = pneg %p106
      $region42: #{projection_mlp.5} parent=39 // pred_check_branch
        %199 = sbr.rel (%p197) target = $region44
      $region43: #{projection_mlp.5} parent=39 // pred_region
        %p200 = scmp.lt.s32.totalorder %s15, 3
        %s201 = scalar_select %p200, %s15, 3
        %s202 = smul.addr %s201, 8
        %s203 = scalar_lea.vmem %s3, %s202
      $region44: #{projection_mlp.5} parent=39 // pred_fallthru
        _
    $region40: #{projection_mlp.5} parent=5 // pred_fallthru
      _
  $region6: #{projection_mlp.5} parent=0 // loop_footer
    %s13 = sadd.s32 1, %s9
  $region7: #{projection_mlp.5} parent=0 // loop_footer_branch
    %8 = sbr.rel target = $region3
  $region8: #{projection_mlp.5} parent=0 // loop_exit
    _

// kernel: projection_mlp.3
$region0: #{projection_mlp.3}
  #allocation0 [shape = 'u32[]', space=smem, size = 0x4, offset = 0x4, fixed_abs, tag = 'smem constant byte address 0x4 - core index']
  #allocation1 [shape = 'u32[144,128]{1,0:T(1,128)}', space=vmem, size = 0x12000, scoped, tag = 'internal scratch']
  %s0 = inlined_call_operand.vmem [shape: bf16[32,128], index: 0, kind: input, shape index: {}]
  %s1 = inlined_call_operand.vmem [shape: bf16[128,128], index: 1, kind: input, shape index: {}]
  %s2 = inlined_call_operand.vmem [shape: bf16[32,128], index: 2, kind: output, shape index: {0}]
  %s3 = inlined_call_operand.vmem [shape: f32[4,2,128], index: 3, kind: output, shape index: {1}]
  %4 = xla_tuple %s2, %s3
  %s5 = sld [smem:[#allocation0]]
  $region49: #{projection_mlp.3} parent=0
    _
  %s7 = ssub.s32 1, %s5
  %s8 = scalar_select 0, %s7, %s5
  loop: start=0, step=1, limit=6
  $region2: #{projection_mlp.3} parent=0 // loop_pre_header
    _
  $region3: #{projection_mlp.3} parent=0 // loop_header
    %s10 = sphi 0, %s14
    %p11 = scmp.ge.s32.totalorder %s10, 6
    %s20 = sphi 0, %s22
    %s23 = sphi 0, %s20
    %s24 = sphi 0, %s23
    %s40 = sphi 0, %s24
    %s44 = sphi 0, %s44
    %s46 = sphi 0, %s44
    %s47 = sphi 0, %s46
    %s61 = sphi 0, %s47
    %s67 = sphi 0, %s69
    %s70 = sphi 0, %s67
    %s71 = sphi 0, %s70
    %s87 = sphi 0, %s71
    %s93 = sphi 0, %s95
    %s96 = sphi 0, %s93
    %s97 = sphi 0, %s96
    %s113 = sphi 0, %s97
  $region4: #{projection_mlp.3} parent=0 // loop_header_branch
    %13 = sbr.rel (%p11) target = $region8
  $region5: #{projection_mlp.3} parent=0 // loop_body
    %s15 = ssub.s32 %s10, 1
    %s16 = ssub.s32 %s10, 2
    %s17 = sadd.s32 %s10, 1
    %s18 = ssub.s32 %s10, %s17
    %p19 = scmp.eq.s32.totalorder %s18, 0
    %s21 = sadd.s32 %s20, 1
    %s22 = scalar_select %p19, %s20, %s21
    %p25 = pneg %p19
    %p26 = scmp.eq.s32.totalorder %s10, 3
    %p27 = por %p25, %p26
    %p28 = scmp.ne.s32.totalorder %s20, %s23
    %p29 = scmp.eq.s32.totalorder %s10, 0
    %p30 = por %p28, %p29
    %p31 = scmp.ne.s32.totalorder %s20, %s23
    %p32 = scmp.eq.s32.totalorder %s15, 3
    %p33 = por %p31, %p32
    %p34 = scmp.ne.s32.totalorder %s23, %s24
    %p35 = scmp.eq.s32.totalorder %s15, 0
    %p36 = por %p34, %p35
    %p37 = scmp.ne.s32.totalorder %s23, %s24
    %p38 = scmp.eq.s32.totalorder %s16, 3
    %p39 = por %p37, %p38
    %p41 = scmp.ne.s32.totalorder %s24, %s40
    %p42 = scmp.eq.s32.totalorder %s16, 0
    %p43 = por %p41, %p42
    %s45 = sadd.s32 %s44, 1
    %p48 = scmp.eq.s32.totalorder %s10, 3
    %p49 = scmp.ne.s32.totalorder %s44, %s46
    %p50 = scmp.eq.s32.totalorder %s10, 0
    %p51 = por %p49, %p50
    %p52 = scmp.ne.s32.totalorder %s44, %s46
    %p53 = scmp.eq.s32.totalorder %s15, 3
    %p54 = por %p52, %p53
    %p55 = scmp.ne.s32.totalorder %s46, %s47
    %p56 = scmp.eq.s32.totalorder %s15, 0
    %p57 = por %p55, %p56
    %p58 = scmp.ne.s32.totalorder %s46, %s47
    %p59 = scmp.eq.s32.totalorder %s16, 3
    %p60 = por %p58, %p59
    %p62 = scmp.ne.s32.totalorder %s47, %s61
    %p63 = scmp.eq.s32.totalorder %s16, 0
    %p64 = por %p62, %p63
    %s65 = ssub.s32 %s10, %s17
    %p66 = scmp.eq.s32.totalorder %s65, 0
    %s68 = sadd.s32 %s67, 1
    %s69 = scalar_select %p66, %s67, %s68
    %p72 = pneg %p66
    %p73 = scmp.eq.s32.totalorder %s10, 3
    %p74 = por %p72, %p73
    %p75 = scmp.ne.s32.totalorder %s67, %s70
    %p76 = scmp.eq.s32.totalorder %s10, 0
    %p77 = por %p75, %p76
    %p78 = scmp.ne.s32.totalorder %s67, %s70
    %p79 = scmp.eq.s32.totalorder %s15, 3
    %p80 = por %p78, %p79
    %p81 = scmp.ne.s32.totalorder %s70, %s71
    %p82 = scmp.eq.s32.totalorder %s15, 0
    %p83 = por %p81, %p82
    %p84 = scmp.ne.s32.totalorder %s70, %s71
    %p85 = scmp.eq.s32.totalorder %s16, 3
    %p86 = por %p84, %p85
    %p88 = scmp.ne.s32.totalorder %s71, %s87
    %p89 = scmp.eq.s32.totalorder %s16, 0
    %p90 = por %p88, %p89
    %s91 = ssub.s32 %s10, %s17
    %p92 = scmp.eq.s32.totalorder %s91, 0
    %s94 = sadd.s32 %s93, 1
    %s95 = scalar_select %p92, %s93, %s94
    %p98 = pneg %p92
    %p99 = scmp.eq.s32.totalorder %s10, 3
    %p100 = por %p98, %p99
    %p101 = scmp.ne.s32.totalorder %s93, %s96
    %p102 = scmp.eq.s32.totalorder %s10, 0
    %p103 = por %p101, %p102
    %p104 = scmp.ne.s32.totalorder %s93, %s96
    %p105 = scmp.eq.s32.totalorder %s15, 3
    %p106 = por %p104, %p105
    %p107 = scmp.ne.s32.totalorder %s96, %s97
    %p108 = scmp.eq.s32.totalorder %s15, 0
    %p109 = por %p107, %p108
    %p110 = scmp.ne.s32.totalorder %s96, %s97
    %p111 = scmp.eq.s32.totalorder %s16, 3
    %p112 = por %p110, %p111
    %p114 = scmp.ne.s32.totalorder %s97, %s113
    %p115 = scmp.eq.s32.totalorder %s16, 0
    %p116 = por %p114, %p115
    %p117 = scmp.le.s32.totalorder 1, %s10
    %p118 = scmp.lt.s32.totalorder %s10, 5
    %p119 = pnand %p117, %p118
    %p120 = pneg %p119
    // Predicated region
    $region9: #{projection_mlp.3} parent=5 // pred_check
      _
    $region10: #{projection_mlp.3} parent=5 // pred_check_branch
      %122 = sbr.rel (%p119) target = $region12
    $region11: #{projection_mlp.3} parent=5 // pred_region
      %s123 = ssub.s32 %s10, 1
      // Predicated region
      $region13: #{projection_mlp.3} parent=11 // pred_check
        %p124 = pneg %p57
      $region14: #{projection_mlp.3} parent=11 // pred_check_branch
        %126 = sbr.rel (%p124) target = $region16
      $region15: #{projection_mlp.3} parent=11 // pred_region
        _
      $region16: #{projection_mlp.3} parent=11 // pred_fallthru
        _
    $region12: #{projection_mlp.3} parent=5 // pred_fallthru
      _
    %p127 = scmp.lt.s32.totalorder %s10, 4
    // Predicated region
    $region17: #{projection_mlp.3} parent=5 // pred_check
      %p128 = pneg %p127
    $region18: #{projection_mlp.3} parent=5 // pred_check_branch
      %130 = sbr.rel (%p128) target = $region20
    $region19: #{projection_mlp.3} parent=5 // pred_region
      // Predicated region
      $region21: #{projection_mlp.3} parent=19 // pred_check
        %p131 = pneg %p30
      $region22: #{projection_mlp.3} parent=19 // pred_check_branch
        %133 = sbr.rel (%p131) target = $region24
      $region23: #{projection_mlp.3} parent=19 // pred_region
        %p134 = scmp.lt.s32.totalorder %s10, 3
        %s135 = scalar_select %p134, %s10, 3
        %s136 = smul.addr %s135, 4
        %s137 = scalar_lea.vmem %s0, %s136
      $region24: #{projection_mlp.3} parent=19 // pred_fallthru
        _
    $region20: #{projection_mlp.3} parent=5 // pred_fallthru
      _
    %p138 = scmp.le.s32.totalorder 1, %s10
    %p139 = scmp.lt.s32.totalorder %s10, 5
    %p140 = pnand %p138, %p139
    %p141 = pneg %p140
    // Predicated region
    $region25: #{projection_mlp.3} parent=5 // pred_check
      _
    $region26: #{projection_mlp.3} parent=5 // pred_check_branch
      %143 = sbr.rel (%p140) target = $region28
    $region27: #{projection_mlp.3} parent=5 // pred_region
      %s144 = ssub.s32 %s10, 1
      %p145 = scmp.lt.s32.totalorder %s15, 3
      %s146 = scalar_select %p145, %s15, 3
      %s147 = smul.addr %s146, 4
      %s148 = scalar_lea.vmem %s0, %s147
      %p149 = pneg %p36
      %p150 = pneg %p33
      %p151 = pneg %p57
      %p152 = pneg %p54
      %p153 = pneg %p83
      %p154 = pneg %p80
      %p155 = scmp.lt.s32.totalorder %s15, 3
      %s156 = scalar_select %p155, %s15, 3
      %s157 = smul.addr %s156, 4
      %s158 = scalar_lea.vmem %s2, %s157
      %p159 = pneg %p109
      %p160 = pneg %p106
      %p161 = scmp.lt.s32.totalorder %s15, 3
      %s162 = scalar_select %p161, %s15, 3
      %s163 = smul.addr %s162, 2
      %s164 = scalar_lea.vmem %s3, %s163
      %p165 = scmp.lt.s32.totalorder %s15, 3
      %s166 = scalar_select %p165, %s15, 3
      %s167 = smul.addr %s166, 4
      %s168 = scalar_lea.vmem %s0, %s167
      %p169 = scmp.lt.s32.totalorder %s15, 3
      %s170 = scalar_select %p169, %s15, 3
      %s171 = smul.addr %s170, 4
      %s172 = scalar_lea.vmem %s2, %s171
      %p173 = scmp.lt.s32.totalorder %s15, 3
      %s174 = scalar_select %p173, %s15, 3
      %s175 = smul.addr %s174, 2
      %s176 = scalar_lea.vmem %s3, %s175
      %v178 = vld [vmem:[%s168] sm:$0xf]
      %v179 = vld [vmem:[%s1] sm:$0xf]
      %v180 = vld [vmem:[%s1 + $0x4] sm:$0xf]
      %v181 = vld [vmem:[%s1 + $0x8] sm:$0xf]
      %v182 = vld [vmem:[%s1 + $0xc] sm:$0xf]
      %v183 = vld [vmem:[%s1 + $0x10] sm:$0xf]
      %v184 = vld [vmem:[%s1 + $0x14] sm:$0xf]
      %v185 = vld [vmem:[%s1 + $0x18] sm:$0xf]
      %v186 = vld [vmem:[%s1 + $0x1c] sm:$0xf]
      %v187 = vld [vmem:[%s1 + $0x20] sm:$0xf]
      %v188 = vld [vmem:[%s1 + $0x24] sm:$0xf]
      %v189 = vld [vmem:[%s1 + $0x28] sm:$0xf]
      %v190 = vld [vmem:[%s1 + $0x2c] sm:$0xf]
      %v191 = vld [vmem:[%s1 + $0x30] sm:$0xf]
      %v192 = vld [vmem:[%s1 + $0x34] sm:$0xf]
      %v193 = vld [vmem:[%s1 + $0x38] sm:$0xf]
      %v194 = vld [vmem:[%s1 + $0x3c] sm:$0xf]
      %v211 = vunpack.c.l.b16 %v179
      %v212 = vunpack.c.l.b16 %v180
      %v213 = vunpack.c.l.b16 %v181
      %v214 = vunpack.c.l.b16 %v182
      %v215 = vunpack.c.l.b16 %v183
      %v216 = vunpack.c.l.b16 %v184
      %v217 = vunpack.c.l.b16 %v185
      %v218 = vunpack.c.l.b16 %v186
      %v219 = vunpack.c.l.b16 %v187
      %v220 = vunpack.c.l.b16 %v188
      %v221 = vunpack.c.l.b16 %v189
      %v222 = vunpack.c.l.b16 %v190
      %v223 = vunpack.c.l.b16 %v191
      %v224 = vunpack.c.l.b16 %v192
      %v225 = vunpack.c.l.b16 %v193
      %v226 = vunpack.c.l.b16 %v194
      %v227 = vpack.c.b16 %v212, %v211
      %v228 = vpack.c.b16 %v214, %v213
      %v229 = vpack.c.b16 %v216, %v215
      %v230 = vpack.c.b16 %v218, %v217
      %v231 = vpack.c.b16 %v220, %v219
      %v232 = vpack.c.b16 %v222, %v221
      %v233 = vpack.c.b16 %v224, %v223
      %v234 = vpack.c.b16 %v226, %v225
      %243 = vmatprep.subr.bf16.mxu0 0
      %244 = vmatpush1.bf16.msra.mxu0 %v227
      %245 = vmatprep.subr.bf16.mxu0 0
      %246 = vmatpush1.bf16.msra.mxu0 %v228
      %247 = vmatprep.subr.bf16.mxu0 0
      %248 = vmatpush1.bf16.msra.mxu0 %v229
      %249 = vmatprep.subr.bf16.mxu0 0
      %250 = vmatpush1.bf16.msra.mxu0 %v230
      %251 = vmatprep.subr.bf16.mxu0 0
      %252 = vmatpush1.bf16.msra.mxu0 %v231
      %253 = vmatprep.subr.bf16.mxu0 0
      %254 = vmatpush1.bf16.msra.mxu0 %v232
      %255 = vmatprep.subr.bf16.mxu0 0
      %256 = vmatpush1.bf16.msra.mxu0 %v233
      %257 = vmatprep.subr.bf16.mxu0 0
      %258 = vmatpush1.bf16.msra.mxu0 %v234
      %259 = vmatprep.subr.bf16.mxu0 0
      %260 = vmatpush1.bf16.msra.mxu0 0
      %261 = vmatprep.subr.bf16.mxu0 0
      %262 = vmatpush1.bf16.msra.mxu0 0
      %263 = vmatprep.subr.bf16.mxu0 0
      %264 = vmatpush1.bf16.msra.mxu0 0
      %265 = vmatprep.subr.bf16.mxu0 0
      %266 = vmatpush1.bf16.msra.mxu0 0
      %267 = vmatprep.subr.bf16.mxu0 0
      %268 = vmatpush1.bf16.msra.mxu0 0
      %269 = vmatprep.subr.bf16.mxu0 0
      %270 = vmatpush1.bf16.msra.mxu0 0
      %271 = vmatprep.subr.bf16.mxu0 0
      %272 = vmatpush1.bf16.msra.mxu0 0
      %273 = vmatprep.subr.bf16.mxu0 0
      %274 = vmatpush1.bf16.msra.mxu0 0
      %275 = vmatprep.mubr.bf16.mxu0 0
      %276 = vmatmul.mubr.bf16.gmra.mrb[0].mxu0 %v178
      %v277 = vpop.f32.mrb[0].mxu0
      %v278 = vadd.f32 0.0, %v277
      %v279 = vpop.f32.mrb[0].mxu0
      %v280 = vpop.f32.mrb[0].mxu0
      %v281 = vpop.f32.mrb[0].mxu0
      %282 = vdwg.mxu0
      %v283 = vpack.c.bf16 %v278, %v278
      %284 = vst [vmem:[%s172] sm:$0xf] %v283
      %v285 = vrot.slane %v278, 4
      %v286 = vadd.f32 %v278, %v285
      %v287 = vrot.slane %v286, 2
      %v288 = vadd.f32 %v286, %v287
      %v289 = vrot.slane %v288, 1
      %v290 = vadd.f32 %v288, %v289
      %291 = vst [vmem:[%s176] sm:$0x1] %v290
      %v292 = vmul.f32 %v278, %v278
      %v293 = vrot.slane %v292, 4
      %v294 = vadd.f32 %v292, %v293
      %v295 = vrot.slane %v294, 2
      %v296 = vadd.f32 %v294, %v295
      %v297 = vrot.slane %v296, 1
      %v298 = vadd.f32 %v296, %v297
      %299 = vst [vmem:[%s176 + $0x1] sm:$0x1] %v298
      %p300 = scmp.lt.s32.totalorder %s15, 3
      %s301 = scalar_select %p300, %s15, 3
      %s302 = smul.addr %s301, 4
      %s303 = scalar_lea.vmem %s2, %s302
      %p304 = scmp.lt.s32.totalorder %s15, 3
      %s305 = scalar_select %p304, %s15, 3
      %s306 = smul.addr %s305, 2
      %s307 = scalar_lea.vmem %s3, %s306
      // Predicated region
      $region29: #{projection_mlp.3} parent=27 // pred_check
        %p308 = pneg %p80
      $region30: #{projection_mlp.3} parent=27 // pred_check_branch
        %310 = sbr.rel (%p308) target = $region32
      $region31: #{projection_mlp.3} parent=27 // pred_region
        _
      $region32: #{projection_mlp.3} parent=27 // pred_fallthru
        _
      // Predicated region
      $region33: #{projection_mlp.3} parent=27 // pred_check
        %p311 = pneg %p106
      $region34: #{projection_mlp.3} parent=27 // pred_check_branch
        %313 = sbr.rel (%p311) target = $region36
      $region35: #{projection_mlp.3} parent=27 // pred_region
        _
      $region36: #{projection_mlp.3} parent=27 // pred_fallthru
        _
    $region28: #{projection_mlp.3} parent=5 // pred_fallthru
      _
    %p314 = scmp.le.s32.totalorder 2, %s10
    // Predicated region
    $region37: #{projection_mlp.3} parent=5 // pred_check
      %p315 = pneg %p314
    $region38: #{projection_mlp.3} parent=5 // pred_check_branch
      %317 = sbr.rel (%p315) target = $region40
    $region39: #{projection_mlp.3} parent=5 // pred_region
      %s318 = ssub.s32 %s10, 2
      // Predicated region
      $region41: #{projection_mlp.3} parent=39 // pred_check
        %p319 = pneg %p86
      $region42: #{projection_mlp.3} parent=39 // pred_check_branch
        %321 = sbr.rel (%p319) target = $region44
      $region43: #{projection_mlp.3} parent=39 // pred_region
        %p322 = scmp.lt.s32.totalorder %s16, 3
        %s323 = scalar_select %p322, %s16, 3
        %s324 = smul.addr %s323, 4
        %s325 = scalar_lea.vmem %s2, %s324
      $region44: #{projection_mlp.3} parent=39 // pred_fallthru
        _
      // Predicated region
      $region45: #{projection_mlp.3} parent=39 // pred_check
        %p326 = pneg %p112
      $region46: #{projection_mlp.3} parent=39 // pred_check_branch
        %328 = sbr.rel (%p326) target = $region48
      $region47: #{projection_mlp.3} parent=39 // pred_region
        %p329 = scmp.lt.s32.totalorder %s16, 3
        %s330 = scalar_select %p329, %s16, 3
        %s331 = smul.addr %s330, 2
        %s332 = scalar_lea.vmem %s3, %s331
      $region48: #{projection_mlp.3} parent=39 // pred_fallthru
        _
    $region40: #{projection_mlp.3} parent=5 // pred_fallthru
      _
  $region6: #{projection_mlp.3} parent=0 // loop_footer
    %s14 = sadd.s32 1, %s10
  $region7: #{projection_mlp.3} parent=0 // loop_footer_branch
    %9 = sbr.rel target = $region3
  $region8: #{projection_mlp.3} parent=0 // loop_exit
    _

// kernel: projection_mlp.4
$region0: #{projection_mlp.4}
  #allocation0 [shape = 'u32[]', space=smem, size = 0x4, offset = 0x4, fixed_abs, tag = 'smem constant byte address 0x4 - core index']
  #allocation1 [shape = 'u32[144,128]{1,0:T(1,128)}', space=vmem, size = 0x12000, scoped, tag = 'internal scratch']
  %s0 = inlined_call_operand.vmem [shape: bf16[32,128], index: 0, kind: input, shape index: {}]
  %s1 = inlined_call_operand.vmem [shape: f32[1,128], index: 1, kind: input, shape index: {}]
  %s2 = inlined_call_operand.vmem [shape: f32[1,128], index: 2, kind: input, shape index: {}]
  %s3 = inlined_call_operand.vmem [shape: bf16[128,128], index: 3, kind: input, shape index: {}]
  %s4 = inlined_call_operand.vmem [shape: bf16[32,128], index: 4, kind: output, shape index: {0}]
  %s5 = inlined_call_operand.vmem [shape: f32[4,2,128], index: 5, kind: output, shape index: {1}]
  %6 = xla_tuple %s4, %s5
  %s7 = sld [smem:[#allocation0]]
  $region57: #{projection_mlp.4} parent=0
    _
  %s9 = ssub.s32 1, %s7
  %s10 = scalar_select 0, %s9, %s7
  loop: start=0, step=1, limit=6
  $region2: #{projection_mlp.4} parent=0 // loop_pre_header
    _
  $region3: #{projection_mlp.4} parent=0 // loop_header
    %s12 = sphi 0, %s16
    %p13 = scmp.ge.s32.totalorder %s12, 6
    %s22 = sphi 0, %s24
    %s25 = sphi 0, %s22
    %s26 = sphi 0, %s25
    %s42 = sphi 0, %s26
    %s46 = sphi 0, %s46
    %s48 = sphi 0, %s46
    %s49 = sphi 0, %s48
    %s63 = sphi 0, %s49
    %s67 = sphi 0, %s67
    %s69 = sphi 0, %s67
    %s70 = sphi 0, %s69
    %s84 = sphi 0, %s70
    %s88 = sphi 0, %s88
    %s90 = sphi 0, %s88
    %s91 = sphi 0, %s90
    %s105 = sphi 0, %s91
    %s111 = sphi 0, %s113
    %s114 = sphi 0, %s111
    %s115 = sphi 0, %s114
    %s131 = sphi 0, %s115
    %s137 = sphi 0, %s139
    %s140 = sphi 0, %s137
    %s141 = sphi 0, %s140
    %s157 = sphi 0, %s141
  $region4: #{projection_mlp.4} parent=0 // loop_header_branch
    %15 = sbr.rel (%p13) target = $region8
  $region5: #{projection_mlp.4} parent=0 // loop_body
    %s17 = ssub.s32 %s12, 1
    %s18 = ssub.s32 %s12, 2
    %s19 = sadd.s32 %s12, 1
    %s20 = ssub.s32 %s12, %s19
    %p21 = scmp.eq.s32.totalorder %s20, 0
    %s23 = sadd.s32 %s22, 1
    %s24 = scalar_select %p21, %s22, %s23
    %p27 = pneg %p21
    %p28 = scmp.eq.s32.totalorder %s12, 3
    %p29 = por %p27, %p28
    %p30 = scmp.ne.s32.totalorder %s22, %s25
    %p31 = scmp.eq.s32.totalorder %s12, 0
    %p32 = por %p30, %p31
    %p33 = scmp.ne.s32.totalorder %s22, %s25
    %p34 = scmp.eq.s32.totalorder %s17, 3
    %p35 = por %p33, %p34
    %p36 = scmp.ne.s32.totalorder %s25, %s26
    %p37 = scmp.eq.s32.totalorder %s17, 0
    %p38 = por %p36, %p37
    %p39 = scmp.ne.s32.totalorder %s25, %s26
    %p40 = scmp.eq.s32.totalorder %s18, 3
    %p41 = por %p39, %p40
    %p43 = scmp.ne.s32.totalorder %s26, %s42
    %p44 = scmp.eq.s32.totalorder %s18, 0
    %p45 = por %p43, %p44
    %s47 = sadd.s32 %s46, 1
    %p50 = scmp.eq.s32.totalorder %s12, 3
    %p51 = scmp.ne.s32.totalorder %s46, %s48
    %p52 = scmp.eq.s32.totalorder %s12, 0
    %p53 = por %p51, %p52
    %p54 = scmp.ne.s32.totalorder %s46, %s48
    %p55 = scmp.eq.s32.totalorder %s17, 3
    %p56 = por %p54, %p55
    %p57 = scmp.ne.s32.totalorder %s48, %s49
    %p58 = scmp.eq.s32.totalorder %s17, 0
    %p59 = por %p57, %p58
    %p60 = scmp.ne.s32.totalorder %s48, %s49
    %p61 = scmp.eq.s32.totalorder %s18, 3
    %p62 = por %p60, %p61
    %p64 = scmp.ne.s32.totalorder %s49, %s63
    %p65 = scmp.eq.s32.totalorder %s18, 0
    %p66 = por %p64, %p65
    %s68 = sadd.s32 %s67, 1
    %p71 = scmp.eq.s32.totalorder %s12, 3
    %p72 = scmp.ne.s32.totalorder %s67, %s69
    %p73 = scmp.eq.s32.totalorder %s12, 0
    %p74 = por %p72, %p73
    %p75 = scmp.ne.s32.totalorder %s67, %s69
    %p76 = scmp.eq.s32.totalorder %s17, 3
    %p77 = por %p75, %p76
    %p78 = scmp.ne.s32.totalorder %s69, %s70
    %p79 = scmp.eq.s32.totalorder %s17, 0
    %p80 = por %p78, %p79
    %p81 = scmp.ne.s32.totalorder %s69, %s70
    %p82 = scmp.eq.s32.totalorder %s18, 3
    %p83 = por %p81, %p82
    %p85 = scmp.ne.s32.totalorder %s70, %s84
    %p86 = scmp.eq.s32.totalorder %s18, 0
    %p87 = por %p85, %p86
    %s89 = sadd.s32 %s88, 1
    %p92 = scmp.eq.s32.totalorder %s12, 3
    %p93 = scmp.ne.s32.totalorder %s88, %s90
    %p94 = scmp.eq.s32.totalorder %s12, 0
    %p95 = por %p93, %p94
    %p96 = scmp.ne.s32.totalorder %s88, %s90
    %p97 = scmp.eq.s32.totalorder %s17, 3
    %p98 = por %p96, %p97
    %p99 = scmp.ne.s32.totalorder %s90, %s91
    %p100 = scmp.eq.s32.totalorder %s17, 0
    %p101 = por %p99, %p100
    %p102 = scmp.ne.s32.totalorder %s90, %s91
    %p103 = scmp.eq.s32.totalorder %s18, 3
    %p104 = por %p102, %p103
    %p106 = scmp.ne.s32.totalorder %s91, %s105
    %p107 = scmp.eq.s32.totalorder %s18, 0
    %p108 = por %p106, %p107
    %s109 = ssub.s32 %s12, %s19
    %p110 = scmp.eq.s32.totalorder %s109, 0
    %s112 = sadd.s32 %s111, 1
    %s113 = scalar_select %p110, %s111, %s112
    %p116 = pneg %p110
    %p117 = scmp.eq.s32.totalorder %s12, 3
    %p118 = por %p116, %p117
    %p119 = scmp.ne.s32.totalorder %s111, %s114
    %p120 = scmp.eq.s32.totalorder %s12, 0
    %p121 = por %p119, %p120
    %p122 = scmp.ne.s32.totalorder %s111, %s114
    %p123 = scmp.eq.s32.totalorder %s17, 3
    %p124 = por %p122, %p123
    %p125 = scmp.ne.s32.totalorder %s114, %s115
    %p126 = scmp.eq.s32.totalorder %s17, 0
    %p127 = por %p125, %p126
    %p128 = scmp.ne.s32.totalorder %s114, %s115
    %p129 = scmp.eq.s32.totalorder %s18, 3
    %p130 = por %p128, %p129
    %p132 = scmp.ne.s32.totalorder %s115, %s131
    %p133 = scmp.eq.s32.totalorder %s18, 0
    %p134 = por %p132, %p133
    %s135 = ssub.s32 %s12, %s19
    %p136 = scmp.eq.s32.totalorder %s135, 0
    %s138 = sadd.s32 %s137, 1
    %s139 = scalar_select %p136, %s137, %s138
    %p142 = pneg %p136
    %p143 = scmp.eq.s32.totalorder %s12, 3
    %p144 = por %p142, %p143
    %p145 = scmp.ne.s32.totalorder %s137, %s140
    %p146 = scmp.eq.s32.totalorder %s12, 0
    %p147 = por %p145, %p146
    %p148 = scmp.ne.s32.totalorder %s137, %s140
    %p149 = scmp.eq.s32.totalorder %s17, 3
    %p150 = por %p148, %p149
    %p151 = scmp.ne.s32.totalorder %s140, %s141
    %p152 = scmp.eq.s32.totalorder %s17, 0
    %p153 = por %p151, %p152
    %p154 = scmp.ne.s32.totalorder %s140, %s141
    %p155 = scmp.eq.s32.totalorder %s18, 3
    %p156 = por %p154, %p155
    %p158 = scmp.ne.s32.totalorder %s141, %s157
    %p159 = scmp.eq.s32.totalorder %s18, 0
    %p160 = por %p158, %p159
    %p161 = scmp.le.s32.totalorder 1, %s12
    %p162 = scmp.lt.s32.totalorder %s12, 5
    %p163 = pnand %p161, %p162
    %p164 = pneg %p163
    // Predicated region
    $region9: #{projection_mlp.4} parent=5 // pred_check
      _
    $region10: #{projection_mlp.4} parent=5 // pred_check_branch
      %166 = sbr.rel (%p163) target = $region12
    $region11: #{projection_mlp.4} parent=5 // pred_region
      %s167 = ssub.s32 %s12, 1
      // Predicated region
      $region13: #{projection_mlp.4} parent=11 // pred_check
        %p168 = pneg %p59
      $region14: #{projection_mlp.4} parent=11 // pred_check_branch
        %170 = sbr.rel (%p168) target = $region16
      $region15: #{projection_mlp.4} parent=11 // pred_region
        _
      $region16: #{projection_mlp.4} parent=11 // pred_fallthru
        _
      // Predicated region
      $region17: #{projection_mlp.4} parent=11 // pred_check
        %p171 = pneg %p80
      $region18: #{projection_mlp.4} parent=11 // pred_check_branch
        %173 = sbr.rel (%p171) target = $region20
      $region19: #{projection_mlp.4} parent=11 // pred_region
        _
      $region20: #{projection_mlp.4} parent=11 // pred_fallthru
        _
      // Predicated region
      $region21: #{projection_mlp.4} parent=11 // pred_check
        %p174 = pneg %p101
      $region22: #{projection_mlp.4} parent=11 // pred_check_branch
        %176 = sbr.rel (%p174) target = $region24
      $region23: #{projection_mlp.4} parent=11 // pred_region
        _
      $region24: #{projection_mlp.4} parent=11 // pred_fallthru
        _
    $region12: #{projection_mlp.4} parent=5 // pred_fallthru
      _
    %p177 = scmp.lt.s32.totalorder %s12, 4
    // Predicated region
    $region25: #{projection_mlp.4} parent=5 // pred_check
      %p178 = pneg %p177
    $region26: #{projection_mlp.4} parent=5 // pred_check_branch
      %180 = sbr.rel (%p178) target = $region28
    $region27: #{projection_mlp.4} parent=5 // pred_region
      // Predicated region
      $region29: #{projection_mlp.4} parent=27 // pred_check
        %p181 = pneg %p32
      $region30: #{projection_mlp.4} parent=27 // pred_check_branch
        %183 = sbr.rel (%p181) target = $region32
      $region31: #{projection_mlp.4} parent=27 // pred_region
        %p184 = scmp.lt.s32.totalorder %s12, 3
        %s185 = scalar_select %p184, %s12, 3
        %s186 = smul.addr %s185, 4
        %s187 = scalar_lea.vmem %s0, %s186
      $region32: #{projection_mlp.4} parent=27 // pred_fallthru
        _
    $region28: #{projection_mlp.4} parent=5 // pred_fallthru
      _
    %p188 = scmp.le.s32.totalorder 1, %s12
    %p189 = scmp.lt.s32.totalorder %s12, 5
    %p190 = pnand %p188, %p189
    %p191 = pneg %p190
    // Predicated region
    $region33: #{projection_mlp.4} parent=5 // pred_check
      _
    $region34: #{projection_mlp.4} parent=5 // pred_check_branch
      %193 = sbr.rel (%p190) target = $region36
    $region35: #{projection_mlp.4} parent=5 // pred_region
      %s194 = ssub.s32 %s12, 1
      %p195 = scmp.lt.s32.totalorder %s17, 3
      %s196 = scalar_select %p195, %s17, 3
      %s197 = smul.addr %s196, 4
      %s198 = scalar_lea.vmem %s0, %s197
      %p199 = pneg %p38
      %p200 = pneg %p35
      %p201 = pneg %p59
      %p202 = pneg %p56
      %p203 = pneg %p80
      %p204 = pneg %p77
      %p205 = pneg %p101
      %p206 = pneg %p98
      %p207 = pneg %p127
      %p208 = pneg %p124
      %p209 = scmp.lt.s32.totalorder %s17, 3
      %s210 = scalar_select %p209, %s17, 3
      %s211 = smul.addr %s210, 4
      %s212 = scalar_lea.vmem %s4, %s211
      %p213 = pneg %p153
      %p214 = pneg %p150
      %p215 = scmp.lt.s32.totalorder %s17, 3
      %s216 = scalar_select %p215, %s17, 3
      %s217 = smul.addr %s216, 2
      %s218 = scalar_lea.vmem %s5, %s217
      %p219 = scmp.lt.s32.totalorder %s17, 3
      %s220 = scalar_select %p219, %s17, 3
      %s221 = smul.addr %s220, 4
      %s222 = scalar_lea.vmem %s0, %s221
      %p223 = scmp.lt.s32.totalorder %s17, 3
      %s224 = scalar_select %p223, %s17, 3
      %s225 = smul.addr %s224, 4
      %s226 = scalar_lea.vmem %s4, %s225
      %p227 = scmp.lt.s32.totalorder %s17, 3
      %s228 = scalar_select %p227, %s17, 3
      %s229 = smul.addr %s228, 2
      %s230 = scalar_lea.vmem %s5, %s229
      %v232 = vld [vmem:[%s222] sm:$0xf]
      %v233 = vunpack.c.l.bf16 %v232
      %v234 = vld [vmem:[%s1] sm:$0x1]
      %v236 = vlaneseq
      %v237 = vshrl.u32 %v236, 7
      %v238 = vsub.s32 0, %v237
      %v239 = vrot.slane %v234, %v238
      %v241 = vmul.f32 %v233, %v239
      %v242 = vld [vmem:[%s2] sm:$0x1]
      %v244 = vlaneseq
      %v245 = vshrl.u32 %v244, 7
      %v246 = vsub.s32 0, %v245
      %v247 = vrot.slane %v242, %v246
      %v249 = vadd.f32 %v241, %v247
      %v250 = vmax.f32 %v249, 0.0
      %v251 = vpack.c.bf16 %v250, %v250
      %v252 = vld [vmem:[%s3] sm:$0xf]
      %v253 = vld [vmem:[%s3 + $0x4] sm:$0xf]
      %v254 = vld [vmem:[%s3 + $0x8] sm:$0xf]
      %v255 = vld [vmem:[%s3 + $0xc] sm:$0xf]
      %v256 = vld [vmem:[%s3 + $0x10] sm:$0xf]
      %v257 = vld [vmem:[%s3 + $0x14] sm:$0xf]
      %v258 = vld [vmem:[%s3 + $0x18] sm:$0xf]
      %v259 = vld [vmem:[%s3 + $0x1c] sm:$0xf]
      %v260 = vld [vmem:[%s3 + $0x20] sm:$0xf]
      %v261 = vld [vmem:[%s3 + $0x24] sm:$0xf]
      %v262 = vld [vmem:[%s3 + $0x28] sm:$0xf]
      %v263 = vld [vmem:[%s3 + $0x2c] sm:$0xf]
      %v264 = vld [vmem:[%s3 + $0x30] sm:$0xf]
      %v265 = vld [vmem:[%s3 + $0x34] sm:$0xf]
      %v266 = vld [vmem:[%s3 + $0x38] sm:$0xf]
      %v267 = vld [vmem:[%s3 + $0x3c] sm:$0xf]
      %v284 = vunpack.c.l.b16 %v252
      %v285 = vunpack.c.l.b16 %v253
      %v286 = vunpack.c.l.b16 %v254
      %v287 = vunpack.c.l.b16 %v255
      %v288 = vunpack.c.l.b16 %v256
      %v289 = vunpack.c.l.b16 %v257
      %v290 = vunpack.c.l.b16 %v258
      %v291 = vunpack.c.l.b16 %v259
      %v292 = vunpack.c.l.b16 %v260
      %v293 = vunpack.c.l.b16 %v261
      %v294 = vunpack.c.l.b16 %v262
      %v295 = vunpack.c.l.b16 %v263
      %v296 = vunpack.c.l.b16 %v264
      %v297 = vunpack.c.l.b16 %v265
      %v298 = vunpack.c.l.b16 %v266
      %v299 = vunpack.c.l.b16 %v267
      %v300 = vpack.c.b16 %v285, %v284
      %v301 = vpack.c.b16 %v287, %v286
      %v302 = vpack.c.b16 %v289, %v288
      %v303 = vpack.c.b16 %v291, %v290
      %v304 = vpack.c.b16 %v293, %v292
      %v305 = vpack.c.b16 %v295, %v294
      %v306 = vpack.c.b16 %v297, %v296
      %v307 = vpack.c.b16 %v299, %v298
      %316 = vmatprep.subr.bf16.mxu0 0
      %317 = vmatpush1.bf16.msra.mxu0 %v300
      %318 = vmatprep.subr.bf16.mxu0 0
      %319 = vmatpush1.bf16.msra.mxu0 %v301
      %320 = vmatprep.subr.bf16.mxu0 0
      %321 = vmatpush1.bf16.msra.mxu0 %v302
      %322 = vmatprep.subr.bf16.mxu0 0
      %323 = vmatpush1.bf16.msra.mxu0 %v303
      %324 = vmatprep.subr.bf16.mxu0 0
      %325 = vmatpush1.bf16.msra.mxu0 %v304
      %326 = vmatprep.subr.bf16.mxu0 0
      %327 = vmatpush1.bf16.msra.mxu0 %v305
      %328 = vmatprep.subr.bf16.mxu0 0
      %329 = vmatpush1.bf16.msra.mxu0 %v306
      %330 = vmatprep.subr.bf16.mxu0 0
      %331 = vmatpush1.bf16.msra.mxu0 %v307
      %332 = vmatprep.subr.bf16.mxu0 0
      %333 = vmatpush1.bf16.msra.mxu0 0
      %334 = vmatprep.subr.bf16.mxu0 0
      %335 = vmatpush1.bf16.msra.mxu0 0
      %336 = vmatprep.subr.bf16.mxu0 0
      %337 = vmatpush1.bf16.msra.mxu0 0
      %338 = vmatprep.subr.bf16.mxu0 0
      %339 = vmatpush1.bf16.msra.mxu0 0
      %340 = vmatprep.subr.bf16.mxu0 0
      %341 = vmatpush1.bf16.msra.mxu0 0
      %342 = vmatprep.subr.bf16.mxu0 0
      %343 = vmatpush1.bf16.msra.mxu0 0
      %344 = vmatprep.subr.bf16.mxu0 0
      %345 = vmatpush1.bf16.msra.mxu0 0
      %346 = vmatprep.subr.bf16.mxu0 0
      %347 = vmatpush1.bf16.msra.mxu0 0
      %348 = vmatprep.mubr.bf16.mxu0 0
      %349 = vmatmul.mubr.bf16.gmra.mrb[0].mxu0 %v251
      %v350 = vpop.f32.mrb[0].mxu0
      %v351 = vadd.f32 0.0, %v350
      %v352 = vpop.f32.mrb[0].mxu0
      %v353 = vpop.f32.mrb[0].mxu0
      %v354 = vpop.f32.mrb[0].mxu0
      %355 = vdwg.mxu0
      %v356 = vpack.c.bf16 %v351, %v351
      %357 = vst [vmem:[%s226] sm:$0xf] %v356
      %s358 = smul.u32 %s17, 8
      %v359 = vlaneseq
      %v360 = vshrl.u32 %v359, 7
      %v361 = vstv %s358
      %v362 = vadd.s32 %v361, %v360
      %vm363 = vcmp.lt.s32.totalorder %v362, 20
      %v364 = vsel %vm363, 1, 0
      %vm365 = vcmp.eq.s32.totalorder %v364, 1
      %v366 = vsel %vm365, %v351, 0.0
      %v367 = vrot.slane %v366, 4
      %v368 = vadd.f32 %v366, %v367
      %v369 = vrot.slane %v368, 2
      %v370 = vadd.f32 %v368, %v369
      %v371 = vrot.slane %v370, 1
      %v372 = vadd.f32 %v370, %v371
      %373 = vst [vmem:[%s230] sm:$0x1] %v372
      %v374 = vmul.f32 %v366, %v366
      %v375 = vrot.slane %v374, 4
      %v376 = vadd.f32 %v374, %v375
      %v377 = vrot.slane %v376, 2
      %v378 = vadd.f32 %v376, %v377
      %v379 = vrot.slane %v378, 1
      %v380 = vadd.f32 %v378, %v379
      %381 = vst [vmem:[%s230 + $0x1] sm:$0x1] %v380
      %p382 = scmp.lt.s32.totalorder %s17, 3
      %s383 = scalar_select %p382, %s17, 3
      %s384 = smul.addr %s383, 4
      %s385 = scalar_lea.vmem %s4, %s384
      %p386 = scmp.lt.s32.totalorder %s17, 3
      %s387 = scalar_select %p386, %s17, 3
      %s388 = smul.addr %s387, 2
      %s389 = scalar_lea.vmem %s5, %s388
      // Predicated region
      $region37: #{projection_mlp.4} parent=35 // pred_check
        %p390 = pneg %p124
      $region38: #{projection_mlp.4} parent=35 // pred_check_branch
        %392 = sbr.rel (%p390) target = $region40
      $region39: #{projection_mlp.4} parent=35 // pred_region
        _
      $region40: #{projection_mlp.4} parent=35 // pred_fallthru
        _
      // Predicated region
      $region41: #{projection_mlp.4} parent=35 // pred_check
        %p393 = pneg %p150
      $region42: #{projection_mlp.4} parent=35 // pred_check_branch
        %395 = sbr.rel (%p393) target = $region44
      $region43: #{projection_mlp.4} parent=35 // pred_region
        _
      $region44: #{projection_mlp.4} parent=35 // pred_fallthru
        _
    $region36: #{projection_mlp.4} parent=5 // pred_fallthru
      _
    %p396 = scmp.le.s32.totalorder 2, %s12
    // Predicated region
    $region45: #{projection_mlp.4} parent=5 // pred_check
      %p397 = pneg %p396
    $region46: #{projection_mlp.4} parent=5 // pred_check_branch
      %399 = sbr.rel (%p397) target = $region48
    $region47: #{projection_mlp.4} parent=5 // pred_region
      %s400 = ssub.s32 %s12, 2
      // Predicated region
      $region49: #{projection_mlp.4} parent=47 // pred_check
        %p401 = pneg %p130
      $region50: #{projection_mlp.4} parent=47 // pred_check_branch
        %403 = sbr.rel (%p401) target = $region52
      $region51: #{projection_mlp.4} parent=47 // pred_region
        %p404 = scmp.lt.s32.totalorder %s18, 3
        %s405 = scalar_select %p404, %s18, 3
        %s406 = smul.addr %s405, 4
        %s407 = scalar_lea.vmem %s4, %s406
      $region52: #{projection_mlp.4} parent=47 // pred_fallthru
        _
      // Predicated region
      $region53: #{projection_mlp.4} parent=47 // pred_check
        %p408 = pneg %p156
      $region54: #{projection_mlp.4} parent=47 // pred_check_branch
        %410 = sbr.rel (%p408) target = $region56
      $region55: #{projection_mlp.4} parent=47 // pred_region
        %p411 = scmp.lt.s32.totalorder %s18, 3
        %s412 = scalar_select %p411, %s18, 3
        %s413 = smul.addr %s412, 2
        %s414 = scalar_lea.vmem %s5, %s413
      $region56: #{projection_mlp.4} parent=47 // pred_fallthru
        _
    $region48: #{projection_mlp.4} parent=5 // pred_fallthru
      _
  $region6: #{projection_mlp.4} parent=0 // loop_footer
    %s16 = sadd.s32 1, %s12
  $region7: #{projection_mlp.4} parent=0 // loop_footer_branch
    %11 = sbr.rel target = $region3
  $region8: #{projection_mlp.4} parent=0 // loop_exit
    _

</llo_original>
